<compile_context>
chip_gen: v7x
topology: tpu7x:2x2x1
jax: 0.10.0
libtpu: 0.0.40
codegen_flags: <defaults>
</compile_context>

<pallas_src>
import numpy as np
import jax
import jax.numpy as jnp
from jax.experimental import pallas as pl
from jax.experimental.pallas import tpu as pltpu

N = 10             # N + 1 = 11 MLP blocks
H = 20             # hidden width of each block (2 -> 20 -> 20 -> 2)
HP = 128           # lane-padded fused hidden width (2 active blocks * 20 = 40 -> 128)
MAX_BLOCK_B = 2048 # batch tile cap (per-step VMEM stays well under limits)


def phi_active(t: float):
    """Indices / coefficients of the (<= 2) nonzero hat-basis functions Phi(t).
    Matches the PyTorch code: t0 = round(t*N); basis[t0] = ((t0+1)/N - t)*N;
    if t0 < N also basis[t0+1] = (t - t0/N)*N."""
    t0 = int(round(t * N))
    c0 = ((t0 + 1) / N - t) * N
    if t0 < N:
        i1, c1 = t0 + 1, (t - t0 / N) * N
    else:
        i1, c1 = t0, 0.0          # second slot inactive, contributes exactly 0
    return (t0, i1), (float(c0), float(c1))


def phi_coeffs(t: float) -> jnp.ndarray:
    """Dense Phi(t) vector (used only by the plain-JAX reference)."""
    basis = np.zeros((N + 1,), dtype=np.float32)
    (i0, i1), (c0, c1) = phi_active(t)
    basis[i0] += c0
    basis[i1] += c1
    return jnp.asarray(basis)


def prepare_stacks(params):
    """Build the 11 device-resident fused weight packs (one per t0).  Done once
    per parameter set; eliminates all per-call host packing and weight H2D."""
    w1, b1, w2, b2, w3, b3 = (np.asarray(p, dtype=np.float32) for p in params)
    w1s = np.zeros((N + 1, 8, HP), np.float32)     # rows 0/1 = input features
    b1s = np.zeros((N + 1, 1, HP), np.float32)
    w2s = np.zeros((N + 1, HP, HP), np.float32)    # block-diagonal second layer
    b2s = np.zeros((N + 1, 1, HP), np.float32)
    w3s = np.zeros((N + 1, 8, HP), np.float32)     # rows 0/1: slot0 W3 cols, rows 2/3: slot1
    b3s = np.zeros((N + 1, 2, HP), np.float32)     # row 0 lanes 0:2 = b3[slot0], row 1 = b3[slot1]
    for t0 in range(N + 1):
        for slot, i in enumerate((t0, min(t0 + 1, N))):
            lo, hi = slot * H, slot * H + H
            w1s[t0, 0:2, lo:hi] = w1[i]
            b1s[t0, 0, lo:hi] = b1[i, 0]
            w2s[t0, lo:hi, lo:hi] = w2[i]
            b2s[t0, 0, lo:hi] = b2[i, 0]
            w3s[t0, 2 * slot + 0, lo:hi] = w3[i][:, 0]
            w3s[t0, 2 * slot + 1, lo:hi] = w3[i][:, 1]
            b3s[t0, slot, 0:2] = b3[i, 0]
    return tuple(jnp.asarray(a) for a in (w1s, b1s, w2s, b2s, w3s, b3s))


def fused_kernel(t0_ref, coef_ref, x_ref, w1_ref, b1_ref, w2_ref, b2_ref,
                 w3_ref, b3_ref, y_ref):
    del t0_ref                      # only consumed by the index_maps
    c0 = coef_ref[0]                # Phi(t) coefficients (SMEM scalars)
    c1 = coef_ref[1]

    # Layer 1 (K=2): two VPU FMAs instead of a nearly-empty MXU pass.
    h = (x_ref[:, 0:1] * w1_ref[0:1, :]
         + x_ref[:, 1:2] * w1_ref[1:2, :]
         + b1_ref[...])
    h = jnp.maximum(h, 0.0)                                  # padding lanes stay 0

    # Layer 2: single [Bb,128] x [128,128] MXU pass (block-diagonal weights).
    h = jnp.dot(h, w2_ref[...], preferred_element_type=jnp.float32) + b2_ref[...]
    h = jnp.maximum(h, 0.0)

    # Layer 3: only 2 live output columns -> 2 VPU multiplies + lane reductions,
    # with Phi(t) folded into the effective weight rows / bias in-kernel.
    w3c0 = c0 * w3_ref[0:1, :] + c1 * w3_ref[2:3, :]         # effective col 0, [1,HP]
    w3c1 = c0 * w3_ref[1:2, :] + c1 * w3_ref[3:4, :]         # effective col 1
    yb0 = c0 * b3_ref[0:1, 0:1] + c1 * b3_ref[1:2, 0:1]      # [1,1]
    yb1 = c0 * b3_ref[0:1, 1:2] + c1 * b3_ref[1:2, 1:2]
    y0 = jnp.sum(h * w3c0, axis=-1, keepdims=True)           # [Bb,1]
    y1 = jnp.sum(h * w3c1, axis=-1, keepdims=True)
    y_ref[:, 0:1] = y0 + yb0                                  # narrow [Bb,2] output
    y_ref[:, 1:2] = y1 + yb1


def _batch_tiling(B: int):
    """Pick (block_b, padded_B). For large batches use >= 2 grid steps so the
    ("parallel",) grid axis can shard across both TensorCores on v7x."""
    Bp8 = ((B + 7) // 8) * 8
    if Bp8 <= 512:
        return Bp8, Bp8
    block = min(MAX_BLOCK_B, ((Bp8 + 15) // 16) * 8)   # ~half of Bp8, 8-aligned
    Bp = ((Bp8 + block - 1) // block) * block
    return block, Bp


def vector_forward(x, stacks, t: float):
    """y = sum_i Blocks_v_i(x) * Phi(t)[i], one fused Pallas kernel call."""
    w1s, b1s, w2s, b2s, w3s, b3s = stacks
    (i0, _i1), (c0, c1) = phi_active(t)
    t0_arr = jnp.array([i0], jnp.int32)           # scalar prefetch: selects weight pack
    coef_arr = jnp.array([c0, c1], jnp.float32)   # SMEM scalars: Phi(t) coefficients

    B = x.shape[0]
    block_b, Bp = _batch_tiling(B)
    if Bp != B:
        x = jnp.pad(x, ((0, Bp - B), (0, 0)))

    flops = Bp * (2 * 2 * HP + 2 * HP * HP + 2 * 2 * HP)
    bytes_accessed = Bp * (2 + 2) * 4 + (8 * HP + HP + HP * HP + HP + 8 * HP + 2 * HP) * 4

    stack_spec = lambda sub, lane: pl.BlockSpec(
        (None, sub, lane), lambda i, t0: (t0[0], 0, 0))

    y = pl.pallas_call(
        fused_kernel,
        out_shape=jax.ShapeDtypeStruct((Bp, 2), jnp.float32),
        grid_spec=pltpu.PrefetchScalarGridSpec(
            num_scalar_prefetch=1,
            grid=(Bp // block_b,),
            in_specs=[
                pl.BlockSpec(memory_space=pltpu.MemorySpace.SMEM),  # (c0, c1)
                pl.BlockSpec((block_b, 2), lambda i, t0: (i, 0)),   # x tile
                stack_spec(8, HP),                                  # W1 pack
                stack_spec(1, HP),                                  # b1 pack
                stack_spec(HP, HP),                                 # W2 block-diagonal
                stack_spec(1, HP),                                  # b2 pack
                stack_spec(8, HP),                                  # W3^T pack
                stack_spec(2, HP),                                  # b3 pack
            ],
            out_specs=pl.BlockSpec((block_b, 2), lambda i, t0: (i, 0)),
        ),
        compiler_params=pltpu.CompilerParams(
            dimension_semantics=("parallel",)),
        cost_estimate=pl.CostEstimate(
            flops=flops, transcendentals=0, bytes_accessed=bytes_accessed),
    )(t0_arr, coef_arr, x, w1s, b1s, w2s, b2s, w3s, b3s)
    return y if Bp == B else y[:B]


def init_params(key):
    """Deterministic synthetic parameters (shapes match Blocks_v: 2->20->20->2)."""
    ks = jax.random.split(key, 6)
    w1 = 0.3 * jax.random.normal(ks[0], (N + 1, 2, 20), jnp.float32)
    b1 = 0.1 * jax.random.normal(ks[1], (N + 1, 1, 20), jnp.float32)
    w2 = 0.3 * jax.random.normal(ks[2], (N + 1, 20, 20), jnp.float32)
    b2 = 0.1 * jax.random.normal(ks[3], (N + 1, 1, 20), jnp.float32)
    w3 = 0.3 * jax.random.normal(ks[4], (N + 1, 20, 2), jnp.float32)
    b3 = 0.1 * jax.random.normal(ks[5], (N + 1, 1, 2), jnp.float32)
    return (w1, b1, w2, b2, w3, b3)


def vector_reference(x, params, t: float):
    """Plain-JAX reference of the PyTorch forward (all 11 blocks, dense Phi)."""
    w1, b1, w2, b2, w3, b3 = params
    coeffs = phi_coeffs(t)
    y = jnp.zeros_like(x)
    for i in range(N + 1):
        h = jax.nn.relu(x @ w1[i] + b1[i, 0])
        h = jax.nn.relu(h @ w2[i] + b2[i, 0])
        o = h @ w3[i] + b3[i, 0]
        y = y + coeffs[i] * o
    return y


if __name__ == "__main__":
    key = jax.random.PRNGKey(0)
    kx, kp = jax.random.split(key)

    B = 8
    x = jax.random.normal(kx, (B, 2), jnp.float32)   # inputs live in R^2
    params = init_params(kp)
    stacks = prepare_stacks(params)                  # once per parameter set
    t = 0.37                                         # scalar time in [0, 1]

    y = vector_forward(x, stacks, t)
    y = jax.block_until_ready(y)

    y_ref = vector_reference(x, params, t)
    assert y.shape == (B, 2)
    assert jnp.allclose(y, y_ref, atol=1e-4, rtol=1e-4), "Pallas kernel mismatch vs reference"

    print("KERNEL_OK")
</pallas_src>

<mosaic_0001>
module attributes {stable_mosaic.version = 11 : i64} {
  func.func @fused_kernel(%arg0: i32, %arg1: memref<1xi32, #tpu.memory_space<smem>>, %arg2: memref<2xf32, #tpu.memory_space<smem>>, %arg3: memref<8x2xf32, #tpu.memory_space<vmem>>, %arg4: memref<1x8x128xf32, #tpu.memory_space<vmem>>, %arg5: memref<1x1x128xf32, #tpu.memory_space<vmem>>, %arg6: memref<1x128x128xf32, #tpu.memory_space<vmem>>, %arg7: memref<1x1x128xf32, #tpu.memory_space<vmem>>, %arg8: memref<1x8x128xf32, #tpu.memory_space<vmem>>, %arg9: memref<1x2x128xf32, #tpu.memory_space<vmem>>, %arg10: memref<8x2xf32, #tpu.memory_space<vmem>>) attributes {dimension_semantics = [#tpu.dimension_semantics<parallel>], iteration_bounds = array<i64: 1>, scalar_prefetch = 1 : i64, scratch_operands = 0 : i64, tpu.core_type = #tpu.core_type<tc>, window_params = [{transform_indices = @transform_0, window_bounds = array<i64: 2>}, {transform_indices = @transform_1, window_bounds = array<i64: 8, 2>}, {transform_indices = @transform_2, window_bounds = array<i64: 1, 8, 128>}, {transform_indices = @transform_3, window_bounds = array<i64: 1, 1, 128>}, {transform_indices = @transform_4, window_bounds = array<i64: 1, 128, 128>}, {transform_indices = @transform_5, window_bounds = array<i64: 1, 1, 128>}, {transform_indices = @transform_6, window_bounds = array<i64: 1, 8, 128>}, {transform_indices = @transform_7, window_bounds = array<i64: 1, 2, 128>}, {transform_indices = @transform_8, window_bounds = array<i64: 8, 2>}]} {
    %c0 = arith.constant 0 : index
    %0 = memref.load %arg2[%c0] : memref<2xf32, #tpu.memory_space<smem>>
    %c1 = arith.constant 1 : index
    %1 = memref.load %arg2[%c1] : memref<2xf32, #tpu.memory_space<smem>>
    %c0_0 = arith.constant 0 : index
    %c0_1 = arith.constant 0 : index
    %2 = vector.load %arg3[%c0_0, %c0_1] : memref<8x2xf32, #tpu.memory_space<vmem>>, vector<8x1xf32>
    %c0_2 = arith.constant 0 : index
    %c0_3 = arith.constant 0 : index
    %c0_4 = arith.constant 0 : index
    %3 = vector.load %arg4[%c0_2, %c0_3, %c0_4] : memref<1x8x128xf32, #tpu.memory_space<vmem>>, vector<1x1x128xf32>
    %4 = vector.shape_cast %3 : vector<1x1x128xf32> to vector<1x128xf32>
    %5 = vector.broadcast %2 : vector<8x1xf32> to vector<8x128xf32>
    %6 = vector.broadcast %4 : vector<1x128xf32> to vector<8x128xf32>
    %7 = arith.mulf %5, %6 : vector<8x128xf32>
    %c0_5 = arith.constant 0 : index
    %c1_6 = arith.constant 1 : index
    %8 = vector.load %arg3[%c0_5, %c1_6] : memref<8x2xf32, #tpu.memory_space<vmem>>, vector<8x1xf32>
    %c0_7 = arith.constant 0 : index
    %c1_8 = arith.constant 1 : index
    %c0_9 = arith.constant 0 : index
    %9 = vector.load %arg4[%c0_7, %c1_8, %c0_9] : memref<1x8x128xf32, #tpu.memory_space<vmem>>, vector<1x1x128xf32>
    %10 = vector.shape_cast %9 : vector<1x1x128xf32> to vector<1x128xf32>
    %11 = vector.broadcast %8 : vector<8x1xf32> to vector<8x128xf32>
    %12 = vector.broadcast %10 : vector<1x128xf32> to vector<8x128xf32>
    %13 = arith.mulf %11, %12 : vector<8x128xf32>
    %14 = arith.addf %7, %13 : vector<8x128xf32>
    %c0_10 = arith.constant 0 : index
    %c0_11 = arith.constant 0 : index
    %c0_12 = arith.constant 0 : index
    %15 = vector.load %arg5[%c0_10, %c0_11, %c0_12] : memref<1x1x128xf32, #tpu.memory_space<vmem>>, vector<1x1x128xf32>
    %16 = vector.shape_cast %15 : vector<1x1x128xf32> to vector<1x128xf32>
    %17 = vector.broadcast %16 : vector<1x128xf32> to vector<8x128xf32>
    %18 = arith.addf %14, %17 : vector<8x128xf32>
    %cst = arith.constant 0.000000e+00 : f32
    %19 = vector.broadcast %cst : f32 to vector<8x128xf32>
    %20 = arith.maximumf %18, %19 : vector<8x128xf32>
    %c0_13 = arith.constant 0 : index
    %c0_14 = arith.constant 0 : index
    %c0_15 = arith.constant 0 : index
    %21 = vector.load %arg6[%c0_13, %c0_14, %c0_15] : memref<1x128x128xf32, #tpu.memory_space<vmem>>, vector<1x128x128xf32>
    %22 = vector.shape_cast %21 : vector<1x128x128xf32> to vector<128x128xf32>
    %cst_16 = arith.constant dense<0.000000e+00> : vector<8x128xf32>
    %23 = tpu.matmul %20, %22, %cst_16 {dimension_numbers = #tpu.dot_dimension_numbers<[1], [0], [0], [1], [0, 0, 1, 1], [], []>} : vector<8x128xf32>, vector<128x128xf32>, vector<8x128xf32> -> vector<8x128xf32>
    %c0_17 = arith.constant 0 : index
    %c0_18 = arith.constant 0 : index
    %c0_19 = arith.constant 0 : index
    %24 = vector.load %arg7[%c0_17, %c0_18, %c0_19] : memref<1x1x128xf32, #tpu.memory_space<vmem>>, vector<1x1x128xf32>
    %25 = vector.shape_cast %24 : vector<1x1x128xf32> to vector<1x128xf32>
    %26 = vector.broadcast %25 : vector<1x128xf32> to vector<8x128xf32>
    %27 = arith.addf %23, %26 : vector<8x128xf32>
    %cst_20 = arith.constant 0.000000e+00 : f32
    %28 = vector.broadcast %cst_20 : f32 to vector<8x128xf32>
    %29 = arith.maximumf %27, %28 : vector<8x128xf32>
    %c0_21 = arith.constant 0 : index
    %c0_22 = arith.constant 0 : index
    %c0_23 = arith.constant 0 : index
    %30 = vector.load %arg8[%c0_21, %c0_22, %c0_23] : memref<1x8x128xf32, #tpu.memory_space<vmem>>, vector<1x1x128xf32>
    %31 = vector.shape_cast %30 : vector<1x1x128xf32> to vector<1x128xf32>
    %32 = vector.broadcast %0 : f32 to vector<1x128xf32>
    %33 = arith.mulf %32, %31 : vector<1x128xf32>
    %c0_24 = arith.constant 0 : index
    %c2 = arith.constant 2 : index
    %c0_25 = arith.constant 0 : index
    %34 = vector.load %arg8[%c0_24, %c2, %c0_25] : memref<1x8x128xf32, #tpu.memory_space<vmem>>, vector<1x1x128xf32>
    %35 = vector.shape_cast %34 : vector<1x1x128xf32> to vector<1x128xf32>
    %36 = vector.broadcast %1 : f32 to vector<1x128xf32>
    %37 = arith.mulf %36, %35 : vector<1x128xf32>
    %38 = arith.addf %33, %37 : vector<1x128xf32>
    %c0_26 = arith.constant 0 : index
    %c1_27 = arith.constant 1 : index
    %c0_28 = arith.constant 0 : index
    %39 = vector.load %arg8[%c0_26, %c1_27, %c0_28] : memref<1x8x128xf32, #tpu.memory_space<vmem>>, vector<1x1x128xf32>
    %40 = vector.shape_cast %39 : vector<1x1x128xf32> to vector<1x128xf32>
    %41 = vector.broadcast %0 : f32 to vector<1x128xf32>
    %42 = arith.mulf %41, %40 : vector<1x128xf32>
    %c0_29 = arith.constant 0 : index
    %c3 = arith.constant 3 : index
    %c0_30 = arith.constant 0 : index
    %43 = vector.load %arg8[%c0_29, %c3, %c0_30] : memref<1x8x128xf32, #tpu.memory_space<vmem>>, vector<1x1x128xf32>
    %44 = vector.shape_cast %43 : vector<1x1x128xf32> to vector<1x128xf32>
    %45 = vector.broadcast %1 : f32 to vector<1x128xf32>
    %46 = arith.mulf %45, %44 : vector<1x128xf32>
    %47 = arith.addf %42, %46 : vector<1x128xf32>
    %c0_31 = arith.constant 0 : index
    %c0_32 = arith.constant 0 : index
    %c0_33 = arith.constant 0 : index
    %48 = vector.load %arg9[%c0_31, %c0_32, %c0_33] : memref<1x2x128xf32, #tpu.memory_space<vmem>>, vector<1x1x1xf32>
    %49 = vector.shape_cast %48 : vector<1x1x1xf32> to vector<1x1xf32>
    %50 = vector.broadcast %0 : f32 to vector<1x1xf32>
    %51 = arith.mulf %50, %49 : vector<1x1xf32>
    %c0_34 = arith.constant 0 : index
    %c1_35 = arith.constant 1 : index
    %c0_36 = arith.constant 0 : index
    %52 = vector.load %arg9[%c0_34, %c1_35, %c0_36] : memref<1x2x128xf32, #tpu.memory_space<vmem>>, vector<1x1x1xf32>
    %53 = vector.shape_cast %52 : vector<1x1x1xf32> to vector<1x1xf32>
    %54 = vector.broadcast %1 : f32 to vector<1x1xf32>
    %55 = arith.mulf %54, %53 : vector<1x1xf32>
    %56 = arith.addf %51, %55 : vector<1x1xf32>
    %c0_37 = arith.constant 0 : index
    %c0_38 = arith.constant 0 : index
    %c1_39 = arith.constant 1 : index
    %57 = vector.load %arg9[%c0_37, %c0_38, %c1_39] : memref<1x2x128xf32, #tpu.memory_space<vmem>>, vector<1x1x1xf32>
    %58 = vector.shape_cast %57 : vector<1x1x1xf32> to vector<1x1xf32>
    %59 = vector.broadcast %0 : f32 to vector<1x1xf32>
    %60 = arith.mulf %59, %58 : vector<1x1xf32>
    %c0_40 = arith.constant 0 : index
    %c1_41 = arith.constant 1 : index
    %c1_42 = arith.constant 1 : index
    %61 = vector.load %arg9[%c0_40, %c1_41, %c1_42] : memref<1x2x128xf32, #tpu.memory_space<vmem>>, vector<1x1x1xf32>
    %62 = vector.shape_cast %61 : vector<1x1x1xf32> to vector<1x1xf32>
    %63 = vector.broadcast %1 : f32 to vector<1x1xf32>
    %64 = arith.mulf %63, %62 : vector<1x1xf32>
    %65 = arith.addf %60, %64 : vector<1x1xf32>
    %66 = vector.broadcast %38 : vector<1x128xf32> to vector<8x128xf32>
    %67 = arith.mulf %29, %66 : vector<8x128xf32>
    %cst_43 = arith.constant dense<0.000000e+00> : vector<8xf32>
    %68 = vector.multi_reduction <add>, %67, %cst_43 [1] : vector<8x128xf32> to vector<8xf32>
    %69 = vector.shape_cast %68 : vector<8xf32> to vector<8x1xf32>
    %70 = vector.broadcast %47 : vector<1x128xf32> to vector<8x128xf32>
    %71 = arith.mulf %29, %70 : vector<8x128xf32>
    %cst_44 = arith.constant dense<0.000000e+00> : vector<8xf32>
    %72 = vector.multi_reduction <add>, %71, %cst_44 [1] : vector<8x128xf32> to vector<8xf32>
    %73 = vector.shape_cast %72 : vector<8xf32> to vector<8x1xf32>
    %74 = vector.broadcast %56 : vector<1x1xf32> to vector<8x1xf32>
    %75 = arith.addf %69, %74 : vector<8x1xf32>
    %c0_45 = arith.constant 0 : index
    %c0_46 = arith.constant 0 : index
    %76 = vector.load %arg10[%c0_45, %c0_46] : memref<8x2xf32, #tpu.memory_space<vmem>>, vector<8x1xf32>
    tpu.vector_store %arg10[%c0_45, %c0_46], %75 {strides = array<i32>} : memref<8x2xf32, #tpu.memory_space<vmem>>, vector<8x1xf32>,
    %77 = vector.broadcast %65 : vector<1x1xf32> to vector<8x1xf32>
    %78 = arith.addf %73, %77 : vector<8x1xf32>
    %c0_47 = arith.constant 0 : index
    %c1_48 = arith.constant 1 : index
    %79 = vector.load %arg10[%c0_47, %c1_48] : memref<8x2xf32, #tpu.memory_space<vmem>>, vector<8x1xf32>
    tpu.vector_store %arg10[%c0_47, %c1_48], %78 {strides = array<i32>} : memref<8x2xf32, #tpu.memory_space<vmem>>, vector<8x1xf32>,
    return
  }
  func.func @transform_0(%arg0: i32, %arg1: memref<1xi32, #tpu.memory_space<smem>>) -> i32 {
    %c0_i32 = arith.constant 0 : i32
    %c0_i32_0 = arith.constant 0 : i32
    return %c0_i32 : i32
  }
  func.func @transform_1(%arg0: i32, %arg1: memref<1xi32, #tpu.memory_space<smem>>) -> (i32, i32) {
    %c0_i32 = arith.constant 0 : i32
    %c0_i32_0 = arith.constant 0 : i32
    return %arg0, %c0_i32 : i32, i32
  }
  func.func @transform_2(%arg0: i32, %arg1: memref<1xi32, #tpu.memory_space<smem>>) -> (i32, i32, i32) {
    %c0 = arith.constant 0 : index
    %0 = memref.load %arg1[%c0] : memref<1xi32, #tpu.memory_space<smem>>
    %c0_i32 = arith.constant 0 : i32
    %c0_i32_0 = arith.constant 0 : i32
    %c0_i32_1 = arith.constant 0 : i32
    return %0, %c0_i32, %c0_i32_0 : i32, i32, i32
  }
  func.func @transform_3(%arg0: i32, %arg1: memref<1xi32, #tpu.memory_space<smem>>) -> (i32, i32, i32) {
    %c0 = arith.constant 0 : index
    %0 = memref.load %arg1[%c0] : memref<1xi32, #tpu.memory_space<smem>>
    %c0_i32 = arith.constant 0 : i32
    %c0_i32_0 = arith.constant 0 : i32
    %c0_i32_1 = arith.constant 0 : i32
    return %0, %c0_i32, %c0_i32_0 : i32, i32, i32
  }
  func.func @transform_4(%arg0: i32, %arg1: memref<1xi32, #tpu.memory_space<smem>>) -> (i32, i32, i32) {
    %c0 = arith.constant 0 : index
    %0 = memref.load %arg1[%c0] : memref<1xi32, #tpu.memory_space<smem>>
    %c0_i32 = arith.constant 0 : i32
    %c0_i32_0 = arith.constant 0 : i32
    %c0_i32_1 = arith.constant 0 : i32
    return %0, %c0_i32, %c0_i32_0 : i32, i32, i32
  }
  func.func @transform_5(%arg0: i32, %arg1: memref<1xi32, #tpu.memory_space<smem>>) -> (i32, i32, i32) {
    %c0 = arith.constant 0 : index
    %0 = memref.load %arg1[%c0] : memref<1xi32, #tpu.memory_space<smem>>
    %c0_i32 = arith.constant 0 : i32
    %c0_i32_0 = arith.constant 0 : i32
    %c0_i32_1 = arith.constant 0 : i32
    return %0, %c0_i32, %c0_i32_0 : i32, i32, i32
  }
  func.func @transform_6(%arg0: i32, %arg1: memref<1xi32, #tpu.memory_space<smem>>) -> (i32, i32, i32) {
    %c0 = arith.constant 0 : index
    %0 = memref.load %arg1[%c0] : memref<1xi32, #tpu.memory_space<smem>>
    %c0_i32 = arith.constant 0 : i32
    %c0_i32_0 = arith.constant 0 : i32
    %c0_i32_1 = arith.constant 0 : i32
    return %0, %c0_i32, %c0_i32_0 : i32, i32, i32
  }
  func.func @transform_7(%arg0: i32, %arg1: memref<1xi32, #tpu.memory_space<smem>>) -> (i32, i32, i32) {
    %c0 = arith.constant 0 : index
    %0 = memref.load %arg1[%c0] : memref<1xi32, #tpu.memory_space<smem>>
    %c0_i32 = arith.constant 0 : i32
    %c0_i32_0 = arith.constant 0 : i32
    %c0_i32_1 = arith.constant 0 : i32
    return %0, %c0_i32, %c0_i32_0 : i32, i32, i32
  }
  func.func @transform_8(%arg0: i32, %arg1: memref<1xi32, #tpu.memory_space<smem>>) -> (i32, i32) {
    %c0_i32 = arith.constant 0 : i32
    %c0_i32_0 = arith.constant 0 : i32
    return %arg0, %c0_i32 : i32, i32
  }
}

</mosaic_0001>

<llo_original>
// kernel: tpu_custom_call.1
$region0: #{tpu_custom_call.1}
  #allocation0 [shape = 'u32[]', space=smem, size = 0x4, offset = 0x4, fixed_abs, tag = 'smem constant byte address 0x4 - core index']
  #allocation1 [shape = 'u32[144,128]{1,0:T(1,128)}', space=vmem, size = 0x12000, scoped, tag = 'internal scratch']
  #allocation2 [shape = 's32[1]{0}', space=sflag, size = 0x4, scoped, tag = 'scoped memory for tpu_custom_call.1']
  #allocation3 [shape = 's32[1]{0:T(128)S(6)}', space=smem, size = 0x200, scoped, tag = 'prefetched SMEM operand 0']
  %s0 = inlined_call_operand.<no memory space> [shape: s32[1], index: 0, kind: input, shape index: {}]
  %s1 = inlined_call_operand.vmem [shape: f32[2], index: 1, kind: input, shape index: {}]
  %s2 = inlined_call_operand.vmem [shape: f32[8,2], index: 2, kind: input, shape index: {}]
  %s3 = inlined_call_operand.hbm [shape: f32[11,8,128], index: 3, kind: input, shape index: {}]
  %s4 = inlined_call_operand.vmem [shape: f32[11,1,128], index: 4, kind: input, shape index: {}]
  %s5 = inlined_call_operand.hbm [shape: f32[11,128,128], index: 5, kind: input, shape index: {}]
  %s6 = inlined_call_operand.hbm [shape: f32[11,1,128], index: 6, kind: input, shape index: {}]
  %s7 = inlined_call_operand.hbm [shape: f32[11,8,128], index: 7, kind: input, shape index: {}]
  %s8 = inlined_call_operand.vmem [shape: f32[11,2,128], index: 8, kind: input, shape index: {}]
  %s9 = inlined_call_operand.vmem [shape: f32[8,2], index: 9, kind: output, shape index: {}]
  %s10 = sld [smem:[#allocation0]]
  $region62: #{tpu_custom_call.1} parent=0
    _
  %s12 = ssub.s32 1, %s10
  %s13 = scalar_select 0, %s12, %s10
  %14 = sst [smem:[#allocation3]] %s0
  $region1: #{tpu_custom_call.1} parent=0
    #allocation4 [shape = 'u8[512]{0}', space=smem, size = 0x200, scoped, tag = 'input window, operand 1, single buffered']
    #allocation5 [shape = 's32[1]{0}', space=sflag, size = 0x4, scoped, tag = 'scoped memory for tpu_custom_call.1']
    #allocation6 [shape = 's32[1]{0}', space=sflag, size = 0x4, scoped, tag = 'scoped memory for tpu_custom_call.1']
    #allocation7 [shape = 'u8[4096]{0}', space=vmem, size = 0x1000, scoped, tag = 'input window, operand 3, single buffered']
    #allocation8 [shape = 'u8[65536]{0}', space=vmem, size = 0x10000, scoped, tag = 'input window, operand 5, single buffered']
    #allocation9 [shape = 's32[1]{0}', space=sflag, size = 0x4, scoped, tag = 'scoped memory for tpu_custom_call.1']
    #allocation10 [shape = 'u8[512]{0}', space=vmem, size = 0x400, scoped, tag = 'input window, operand 6, single buffered']
    #allocation11 [shape = 'u8[4096]{0}', space=vmem, size = 0x1000, scoped, tag = 'input window, operand 7, single buffered']
    #allocation12 [shape = 's32[1]{0}', space=sflag, size = 0x4, scoped, tag = 'scoped memory for tpu_custom_call.1']
    %15 = vsyncpa [#allocation6], 0
    %16 = vsyncpa [#allocation5], 0
    %17 = vsyncpa [#allocation9], 0
    %18 = vsyncpa [#allocation12], 0
    // Predicated region
    $region2: #{tpu_custom_call.1} parent=1 // pred_check
      _
    $region3: #{tpu_custom_call.1} parent=1 // pred_check_branch
      %20 = sbr.rel (0) target = $region5
    $region4: #{tpu_custom_call.1} parent=1 // pred_region
      %s22 = ssub.s32 16, 16
      %23 = vsyncadd [#allocation6], %s22
      %s25 = sshll.u32 %s1, 4
      %s26 = int_to_ptr.vmem [resolvable:$true] %s25
      %28 = dma.vmem_to_smem %s26, 16, [#allocation4], [#allocation6]
    $region5: #{tpu_custom_call.1} parent=1 // pred_fallthru
      _
    // Predicated region
    $region6: #{tpu_custom_call.1} parent=1 // pred_check
      _
    $region7: #{tpu_custom_call.1} parent=1 // pred_check_branch
      %30 = sbr.rel (0) target = $region9
    $region8: #{tpu_custom_call.1} parent=1 // pred_region
      _
    $region9: #{tpu_custom_call.1} parent=1 // pred_fallthru
      _
    // Predicated region
    $region10: #{tpu_custom_call.1} parent=1 // pred_check
      _
    $region11: #{tpu_custom_call.1} parent=1 // pred_check_branch
      %32 = sbr.rel (0) target = $region13
    $region12: #{tpu_custom_call.1} parent=1 // pred_region
      %s33 = sld [smem:[#allocation3]]
      %s35 = ssub.s32 128, 128
      %36 = vsyncadd [#allocation5], %s35
      %s37 = smul.addr %s33, 128
      %s38 = scalar_lea.hbm %s3, %s37
      %s40 = sshll.u32 [#allocation7], 4
      %s41 = int_to_ptr.vmem [resolvable:$true] %s40
      %43 = dma.hbm_to_vmem [thread:$0]  %s38, 128, %s41, [#allocation5]
    $region13: #{tpu_custom_call.1} parent=1 // pred_fallthru
      _
    // Predicated region
    $region14: #{tpu_custom_call.1} parent=1 // pred_check
      _
    $region15: #{tpu_custom_call.1} parent=1 // pred_check_branch
      %45 = sbr.rel (0) target = $region17
    $region16: #{tpu_custom_call.1} parent=1 // pred_region
      %s46 = sld [smem:[#allocation3]]
      %p47 = scmp.lt.s32.totalorder %s46, 10
      %s48 = scalar_select %p47, %s46, 10
      %s49 = scalar_lea.vmem %s4, %s48
      %s50 = sld [smem:[#allocation3]]
    $region17: #{tpu_custom_call.1} parent=1 // pred_fallthru
      _
    // Predicated region
    $region18: #{tpu_custom_call.1} parent=1 // pred_check
      _
    $region19: #{tpu_custom_call.1} parent=1 // pred_check_branch
      %52 = sbr.rel (0) target = $region21
    $region20: #{tpu_custom_call.1} parent=1 // pred_region
      %s53 = sld [smem:[#allocation3]]
      %s55 = ssub.s32 2048, 2048
      %56 = vsyncadd [#allocation9], %s55
      %s57 = smul.addr %s53, 16
      %s58 = smul.addr %s57, 128
      %s59 = scalar_lea.hbm %s5, %s58
      %s60 = sshll.u32 [#allocation8], 4
      %s61 = int_to_ptr.vmem [resolvable:$true] %s60
      %66 = dma.hbm_to_vmem [thread:$0]  %s59, 2048, %s61, [#allocation9], 128, 128, 8
    $region21: #{tpu_custom_call.1} parent=1 // pred_fallthru
      _
    // Predicated region
    $region22: #{tpu_custom_call.1} parent=1 // pred_check
      _
    $region23: #{tpu_custom_call.1} parent=1 // pred_check_branch
      %68 = sbr.rel (0) target = $region25
    $region24: #{tpu_custom_call.1} parent=1 // pred_region
      %s69 = sld [smem:[#allocation3]]
      %s71 = ssub.s32 16, 16
      %72 = vsyncadd [#allocation9], %s71
      %s73 = smul.addr %s69, 16
      %s74 = scalar_lea.hbm %s6, %s73
      %s76 = sshll.u32 [#allocation10], 4
      %s77 = int_to_ptr.vmem [resolvable:$true] %s76
      %79 = dma.hbm_to_vmem [thread:$0]  %s74, 16, %s77, [#allocation9]
    $region25: #{tpu_custom_call.1} parent=1 // pred_fallthru
      _
    // Predicated region
    $region26: #{tpu_custom_call.1} parent=1 // pred_check
      _
    $region27: #{tpu_custom_call.1} parent=1 // pred_check_branch
      %81 = sbr.rel (0) target = $region29
    $region28: #{tpu_custom_call.1} parent=1 // pred_region
      %s82 = sld [smem:[#allocation3]]
      %s84 = ssub.s32 128, 128
      %85 = vsyncadd [#allocation12], %s84
      %s86 = smul.addr %s82, 128
      %s87 = scalar_lea.hbm %s7, %s86
      %s89 = sshll.u32 [#allocation11], 4
      %s90 = int_to_ptr.vmem [resolvable:$true] %s89
      %92 = dma.hbm_to_vmem [thread:$0]  %s87, 128, %s90, [#allocation12]
    $region29: #{tpu_custom_call.1} parent=1 // pred_fallthru
      _
    // Predicated region
    $region30: #{tpu_custom_call.1} parent=1 // pred_check
      _
    $region31: #{tpu_custom_call.1} parent=1 // pred_check_branch
      %94 = sbr.rel (0) target = $region33
    $region32: #{tpu_custom_call.1} parent=1 // pred_region
      %s95 = sld [smem:[#allocation3]]
      %p96 = scmp.lt.s32.totalorder %s95, 10
      %s97 = scalar_select %p96, %s95, 10
      %s98 = smul.addr %s97, 2
      %s99 = scalar_lea.vmem %s8, %s98
      %s100 = sld [smem:[#allocation3]]
    $region33: #{tpu_custom_call.1} parent=1 // pred_fallthru
      _
    // Predicated region
    $region34: #{tpu_custom_call.1} parent=1 // pred_check
      _
    $region35: #{tpu_custom_call.1} parent=1 // pred_check_branch
      %102 = sbr.rel (0) target = $region37
    $region36: #{tpu_custom_call.1} parent=1 // pred_region
      %103 = dma.done [#allocation6], 16
    $region37: #{tpu_custom_call.1} parent=1 // pred_fallthru
      _
    // Predicated region
    $region38: #{tpu_custom_call.1} parent=1 // pred_check
      _
    $region39: #{tpu_custom_call.1} parent=1 // pred_check_branch
      %105 = sbr.rel (0) target = $region41
    $region40: #{tpu_custom_call.1} parent=1 // pred_region
      %106 = dma.done [#allocation5], 128
    $region41: #{tpu_custom_call.1} parent=1 // pred_fallthru
      _
    // Predicated region
    $region42: #{tpu_custom_call.1} parent=1 // pred_check
      _
    $region43: #{tpu_custom_call.1} parent=1 // pred_check_branch
      %108 = sbr.rel (0) target = $region45
    $region44: #{tpu_custom_call.1} parent=1 // pred_region
      %109 = dma.done [#allocation9], 2048
    $region45: #{tpu_custom_call.1} parent=1 // pred_fallthru
      _
    // Predicated region
    $region46: #{tpu_custom_call.1} parent=1 // pred_check
      _
    $region47: #{tpu_custom_call.1} parent=1 // pred_check_branch
      %111 = sbr.rel (0) target = $region49
    $region48: #{tpu_custom_call.1} parent=1 // pred_region
      %112 = dma.done [#allocation9], 16
    $region49: #{tpu_custom_call.1} parent=1 // pred_fallthru
      _
    // Predicated region
    $region50: #{tpu_custom_call.1} parent=1 // pred_check
      _
    $region51: #{tpu_custom_call.1} parent=1 // pred_check_branch
      %114 = sbr.rel (0) target = $region53
    $region52: #{tpu_custom_call.1} parent=1 // pred_region
      %115 = dma.done [#allocation12], 128
    $region53: #{tpu_custom_call.1} parent=1 // pred_fallthru
      _
    %116 = sfence
    %s117 = sld [smem:[#allocation3]]
    %p118 = scmp.lt.s32.totalorder %s117, 10
    %s119 = scalar_select %p118, %s117, 10
    %s120 = scalar_lea.vmem %s4, %s119
    %s121 = sld [smem:[#allocation3]]
    %p122 = scmp.lt.s32.totalorder %s121, 10
    %s123 = scalar_select %p122, %s121, 10
    %s124 = smul.addr %s123, 2
    %s125 = scalar_lea.vmem %s8, %s124
    %s126 = sld [smem:[#allocation3]]
    %s127 = sld [smem:[#allocation3]]
    %p128 = scmp.lt.s32.totalorder %s127, 10
    %s129 = scalar_select %p128, %s127, 10
    %s130 = scalar_lea.vmem %s4, %s129
    %s131 = sld [smem:[#allocation3]]
    %s132 = sld [smem:[#allocation3]]
    %s133 = sld [smem:[#allocation3]]
    %s134 = sld [smem:[#allocation3]]
    %s135 = sld [smem:[#allocation3]]
    %p136 = scmp.lt.s32.totalorder %s135, 10
    %s137 = scalar_select %p136, %s135, 10
    %s138 = smul.addr %s137, 2
    %s139 = scalar_lea.vmem %s8, %s138
    %s140 = sld [smem:[#allocation3]]
    %s141 = sld [smem:[#allocation4]]
    %s142 = sld [smem:[#allocation4 + $0x1]]
    %v143 = vld [vmem:[%s2] sm:$0xff]
    %v144 = vld [vmem:[#allocation7] sm:$0x1]
    %146 = vset.pattern.permute.xlu0 0
    %147 = vperm.xlu0 %146, %v143
    %v148 = vpop.permute.xlu0 %147
    %v150 = vlaneseq
    %v151 = vshrl.u32 %v150, 7
    %v152 = vsub.s32 0, %v151
    %v153 = vrot.slane %v144, %v152
    %v154 = vmul.f32 %v148, %v153
    %v155 = vld [vmem:[#allocation7 + $0x1] sm:$0x1]
    %156 = vset.pattern.permute.xlu0 1
    %157 = vperm.xlu0 %156, %v143
    %v158 = vpop.permute.xlu0 %157
    %v160 = vlaneseq
    %v161 = vshrl.u32 %v160, 7
    %v162 = vsub.s32 0, %v161
    %v163 = vrot.slane %v155, %v162
    %v164 = vmul.f32 %v158, %v163
    %v165 = vadd.f32 %v154, %v164
    %v166 = vld [vmem:[%s130] sm:$0x1]
    %v168 = vlaneseq
    %v169 = vshrl.u32 %v168, 7
    %v170 = vsub.s32 0, %v169
    %v171 = vrot.slane %v166, %v170
    %v173 = vadd.f32 %v165, %v171
    %v174 = vmax.f32 %v173, 0.0
    %v175 = vld [vmem:[#allocation8] sm:$0xff]
    %v176 = vld [vmem:[#allocation8 + $0x8] sm:$0xff]
    %v177 = vld [vmem:[#allocation8 + $0x10] sm:$0xff]
    %v178 = vld [vmem:[#allocation8 + $0x18] sm:$0xff]
    %v179 = vld [vmem:[#allocation8 + $0x20] sm:$0xff]
    %v180 = vld [vmem:[#allocation8 + $0x28] sm:$0xff]
    %v181 = vld [vmem:[#allocation8 + $0x30] sm:$0xff]
    %v182 = vld [vmem:[#allocation8 + $0x38] sm:$0xff]
    %v183 = vld [vmem:[#allocation8 + $0x40] sm:$0xff]
    %v184 = vld [vmem:[#allocation8 + $0x48] sm:$0xff]
    %v185 = vld [vmem:[#allocation8 + $0x50] sm:$0xff]
    %v186 = vld [vmem:[#allocation8 + $0x58] sm:$0xff]
    %v187 = vld [vmem:[#allocation8 + $0x60] sm:$0xff]
    %v188 = vld [vmem:[#allocation8 + $0x68] sm:$0xff]
    %v189 = vld [vmem:[#allocation8 + $0x70] sm:$0xff]
    %v190 = vld [vmem:[#allocation8 + $0x78] sm:$0xff]
    %v191 = vld [vmem:[#allocation10] sm:$0x1]
    %v193 = vlaneseq
    %v194 = vshrl.u32 %v193, 7
    %v195 = vsub.s32 0, %v194
    %v196 = vrot.slane %v191, %v195
    %198 = vmatprep.subr.mxu0 0.0
    %199 = vmatpush1.msra.mxu0 %v175
    %200 = vmatprep.subr.mxu0 0.0
    %201 = vmatpush1.msra.mxu0 %v176
    %202 = vmatprep.subr.mxu0 0.0
    %203 = vmatpush1.msra.mxu0 %v177
    %204 = vmatprep.subr.mxu0 0.0
    %205 = vmatpush1.msra.mxu0 %v178
    %206 = vmatprep.subr.mxu0 0.0
    %207 = vmatpush1.msra.mxu0 %v179
    %208 = vmatprep.subr.mxu0 0.0
    %209 = vmatpush1.msra.mxu0 %v180
    %210 = vmatprep.subr.mxu0 0.0
    %211 = vmatpush1.msra.mxu0 %v181
    %212 = vmatprep.subr.mxu0 0.0
    %213 = vmatpush1.msra.mxu0 %v182
    %214 = vmatprep.subr.mxu0 0.0
    %215 = vmatpush1.msra.mxu0 %v183
    %216 = vmatprep.subr.mxu0 0.0
    %217 = vmatpush1.msra.mxu0 %v184
    %218 = vmatprep.subr.mxu0 0.0
    %219 = vmatpush1.msra.mxu0 %v185
    %220 = vmatprep.subr.mxu0 0.0
    %221 = vmatpush1.msra.mxu0 %v186
    %222 = vmatprep.subr.mxu0 0.0
    %223 = vmatpush1.msra.mxu0 %v187
    %224 = vmatprep.subr.mxu0 0.0
    %225 = vmatpush1.msra.mxu0 %v188
    %226 = vmatprep.subr.mxu0 0.0
    %227 = vmatpush1.msra.mxu0 %v189
    %228 = vmatprep.subr.mxu0 0.0
    %229 = vmatpush1.msra.mxu0 %v190
    %230 = vmatprep.subr.mxu0 0.0
    %231 = vmatpush1.msra.mxu0 0.0
    %232 = vmatprep.subr.mxu0 0.0
    %233 = vmatpush1.msra.mxu0 0.0
    %234 = vmatprep.subr.mxu0 0.0
    %235 = vmatpush1.msra.mxu0 0.0
    %236 = vmatprep.subr.mxu0 0.0
    %237 = vmatpush1.msra.mxu0 0.0
    %238 = vmatprep.subr.mxu0 0.0
    %239 = vmatpush1.msra.mxu0 0.0
    %240 = vmatprep.subr.mxu0 0.0
    %241 = vmatpush1.msra.mxu0 0.0
    %242 = vmatprep.subr.mxu0 0.0
    %243 = vmatpush1.msra.mxu0 0.0
    %244 = vmatprep.subr.mxu0 0.0
    %245 = vmatpush1.msra.mxu0 0.0
    %246 = vmatprep.subr.mxu0 0.0
    %247 = vmatpush1.msra.mxu0 0.0
    %248 = vmatprep.subr.mxu0 0.0
    %249 = vmatpush1.msra.mxu0 0.0
    %250 = vmatprep.subr.mxu0 0.0
    %251 = vmatpush1.msra.mxu0 0.0
    %252 = vmatprep.subr.mxu0 0.0
    %253 = vmatpush1.msra.mxu0 0.0
    %254 = vmatprep.subr.mxu0 0.0
    %255 = vmatpush1.msra.mxu0 0.0
    %256 = vmatprep.subr.mxu0 0.0
    %257 = vmatpush1.msra.mxu0 0.0
    %258 = vmatprep.subr.mxu0 0.0
    %259 = vmatpush1.msra.mxu0 0.0
    %260 = vmatprep.subr.mxu0 0.0
    %261 = vmatpush1.msra.mxu0 0.0
    %262 = vmatprep.mubr.f32.mxu0 0.0
    %263 = vmatmul.mubr.f32.gmra.mrb[0].mxu0 %v174
    %v264 = vpop.f32.mrb[0].mxu0
    %v265 = vadd.f32 %v196, %v264
    %v266 = vpop.f32.mrb[0].mxu0
    %267 = vdwg.mxu0
    %v268 = vmax.f32 %v265, 0.0
    %v269 = vld [vmem:[#allocation11] sm:$0x1]
    %v270 = vstv %s141
    %v271 = vmul.f32 %v270, %v269
    %v272 = vld [vmem:[#allocation11 + $0x2] sm:$0x1]
    %v273 = vstv %s142
    %v274 = vmul.f32 %v273, %v272
    %v275 = vadd.f32 %v271, %v274
    %v276 = vld [vmem:[#allocation11 + $0x1] sm:$0x1]
    %v277 = vmul.f32 %v270, %v276
    %v278 = vld [vmem:[#allocation11 + $0x3] sm:$0x1]
    %v279 = vmul.f32 %v273, %v278
    %v280 = vadd.f32 %v277, %v279
    %v281 = vld [vmem:[%s139] sm:$0x1]
    %v282 = vmul.f32 %v270, %v281
    %v283 = vld [vmem:[%s139 + $0x1] sm:$0x1]
    %v284 = vmul.f32 %v273, %v283
    %v285 = vadd.f32 %v282, %v284
    %v286 = vlaneseq
    %v287 = vshrl.u32 %v286, 7
    %v288 = vsub.s32 0, %v287
    %v289 = vrot.slane %v275, %v288
    %v290 = vmul.f32 %v268, %v289
    %291 = vadd.xlane.f32.xlu0 %v290
    %v292 = vpop.xlane.xlu0 %291
    %v293 = vlaneseq
    %v294 = vshrl.u32 %v293, 7
    %v295 = vsub.s32 0, %v294
    %v296 = vrot.slane %v280, %v295
    %v297 = vmul.f32 %v268, %v296
    %298 = vadd.xlane.f32.xlu0 %v297
    %v299 = vpop.xlane.xlu0 %298
    %v300 = vlaneseq
    %v301 = vshrl.u32 %v300, 7
    %v302 = vsub.s32 0, %v301
    %v303 = vrot.slane %v285, %v302
    %v304 = vadd.f32 %v292, %v303
    %vm305 = vcmask 7168
    %306 = vst.msk [vmem:[%s9] sm:$0xff] %vm305, %v304
    %v307 = vadd.f32 %v299, %v303
    %vm308 = vcmask 15368
    %309 = vst.msk [vmem:[%s9] sm:$0xff] %vm308, %v307
    // Predicated region
    $region54: #{tpu_custom_call.1} parent=1 // pred_check
      _
    $region55: #{tpu_custom_call.1} parent=1 // pred_check_branch
      %311 = sbr.rel (0) target = $region57
    $region56: #{tpu_custom_call.1} parent=1 // pred_region
      _
    $region57: #{tpu_custom_call.1} parent=1 // pred_fallthru
      _
    // Predicated region
    $region58: #{tpu_custom_call.1} parent=1 // pred_check
      _
    $region59: #{tpu_custom_call.1} parent=1 // pred_check_branch
      %313 = sbr.rel (0) target = $region61
    $region60: #{tpu_custom_call.1} parent=1 // pred_region
      _
    $region61: #{tpu_custom_call.1} parent=1 // pred_fallthru
      _
    %314 = vsyncpa [#allocation5], 1
    %315 = vsyncpa [#allocation9], 1
    %316 = vsyncpa [#allocation12], 1
    %317 = vsyncpa [#allocation6], 1

</llo_original>
